<compile_context>
chip_gen: v5e
topology: v5e:2x2
jax: 0.10.0
libtpu: 0.0.40
codegen_flags: <defaults>
</compile_context>

<pallas_src>
import jax
import jax.numpy as jnp
from jax.experimental import pallas as pl
from jax.experimental.pallas import tpu as pltpu


# -----------------------------------------------------------------------------
# Fused kernel (built per (num_layers, with_state) configuration)
# -----------------------------------------------------------------------------
def _make_kernel(num_layers, with_state):
    """Kernel refs (in order):
        x, then per layer: [h] w_ir w_iz w_in [w_hr w_hz w_hn] b_r b_z b_in b_hn,
        then fc: w1 b1 w2 b2 w3 b3, then the single output ref.
    """

    def kernel(*refs):
        refs = list(refs)
        out_ref = refs.pop()
        it = iter(refs)

        y = next(it)[...]                              # [bb, in0] f32 activations

        for _ in range(num_layers):
            if with_state:
                h = next(it)[...]                      # [bb, H] f32
            w_ir = next(it)[...]                       # [in_l, H] bf16 (per-gate)
            w_iz = next(it)[...]
            w_in = next(it)[...]
            if with_state:
                w_hr = next(it)[...]                   # [H, H] bf16
                w_hz = next(it)[...]
                w_hn = next(it)[...]
            b_r = next(it)[...]                        # [1, H] f32 (= b_ir + b_hr)
            b_z = next(it)[...]                        # [1, H] f32 (= b_iz + b_hz)
            b_in = next(it)[...]                       # [1, H] f32
            b_hn = next(it)[...]                       # [1, H] f32

            yc = y.astype(w_ir.dtype)                  # bf16 MXU inputs
            i_r = jnp.dot(yc, w_ir, preferred_element_type=jnp.float32)
            i_z = jnp.dot(yc, w_iz, preferred_element_type=jnp.float32)
            i_n = jnp.dot(yc, w_in, preferred_element_type=jnp.float32)

            if with_state:
                hc = h.astype(w_hr.dtype)
                h_r = jnp.dot(hc, w_hr, preferred_element_type=jnp.float32)
                h_z = jnp.dot(hc, w_hz, preferred_element_type=jnp.float32)
                h_n = jnp.dot(hc, w_hn, preferred_element_type=jnp.float32)
                r = jax.nn.sigmoid(i_r + h_r + b_r)
                z = jax.nn.sigmoid(i_z + h_z + b_z)
                n = jnp.tanh(i_n + b_in + r * (h_n + b_hn))
                y = (1.0 - z) * n + z * h
            else:
                # Zero initial hidden state: W_hh @ 0 == 0 and z*h == 0.
                r = jax.nn.sigmoid(i_r + b_r)
                z = jax.nn.sigmoid(i_z + b_z)
                n = jnp.tanh(i_n + b_in + r * b_hn)
                y = (1.0 - z) * n

        # fc head: Linear -> ReLU -> Linear -> ReLU -> Linear (dropout = identity)
        w1 = next(it)[...]; b1 = next(it)[...]
        w2 = next(it)[...]; b2 = next(it)[...]
        w3 = next(it)[...]; b3 = next(it)[...]
        h1 = jnp.maximum(
            jnp.dot(y.astype(w1.dtype), w1, preferred_element_type=jnp.float32) + b1,
            0.0)
        h2 = jnp.maximum(
            jnp.dot(h1.astype(w2.dtype), w2, preferred_element_type=jnp.float32) + b2,
            0.0)
        out_ref[...] = (
            jnp.dot(h2.astype(w3.dtype), w3, preferred_element_type=jnp.float32) + b3)

    return kernel


# -----------------------------------------------------------------------------
# Forward wrapper (single pallas_call)
# -----------------------------------------------------------------------------
def my_gru_forward(kparams, x, state=None, *, batch_block=128):
    """Equivalent of MyGRU.forward(x, state) in eval mode. Returns [B, output]."""
    gru = kparams["gru"]
    fc = kparams["fc"]
    num_layers = len(gru)
    batch = x.shape[0]
    out_dim = fc[-1][0].shape[1]
    with_state = state is not None

    bb = batch if batch <= batch_block else batch_block
    grid = (pl.cdiv(batch, bb),)

    def batch_spec(arr):
        nd = arr.ndim
        return pl.BlockSpec((bb,) + arr.shape[1:],
                            lambda i, _n=nd: (i,) + (0,) * (_n - 1))

    def full_spec(arr):
        nd = arr.ndim
        return pl.BlockSpec(arr.shape, lambda i, _n=nd: (0,) * _n)

    arrays = [x]
    specs = [batch_spec(x)]
    layer_keys = (("w_ir", "w_iz", "w_in")
                  + (("w_hr", "w_hz", "w_hn") if with_state else ())
                  + ("b_r", "b_z", "b_in", "b_hn"))
    for layer in range(num_layers):
        if with_state:
            h_l = state[layer]                         # [B, H]
            arrays.append(h_l)
            specs.append(batch_spec(h_l))
        for k in layer_keys:
            a = gru[layer][k]
            arrays.append(a)
            specs.append(full_spec(a))
    for (w, b) in fc:
        arrays.append(w); specs.append(full_spec(w))
        arrays.append(b); specs.append(full_spec(b))

    kernel = _make_kernel(num_layers, with_state)
    return pl.pallas_call(
        kernel,
        out_shape=jax.ShapeDtypeStruct((batch, out_dim), jnp.float32),
        grid=grid,
        in_specs=specs,
        out_specs=pl.BlockSpec((bb, out_dim), lambda i: (i, 0)),
        compiler_params=pltpu.CompilerParams(
            dimension_semantics=("parallel",)),
    )(*arrays)


# -----------------------------------------------------------------------------
# Parameter construction (PyTorch-layout) and kernel-layout preparation
# -----------------------------------------------------------------------------
def init_params(key, input_size, hidden_size, num_layers, output_size):
    """uniform(-1/sqrt(H), 1/sqrt(H)) init, PyTorch GRU/Linear weight layout."""
    params = {"gru": [], "fc": []}
    bound = 1.0 / float(hidden_size) ** 0.5

    def u(k, shape):
        return jax.random.uniform(k, shape, jnp.float32, -bound, bound)

    keys = iter(jax.random.split(key, num_layers * 4 + 6))
    for layer in range(num_layers):
        in_dim = input_size if layer == 0 else hidden_size
        params["gru"].append({
            "w_ih": u(next(keys), (3 * hidden_size, in_dim)),   # [3H, in]
            "w_hh": u(next(keys), (3 * hidden_size, hidden_size)),
            "b_ih": u(next(keys), (3 * hidden_size,)),
            "b_hh": u(next(keys), (3 * hidden_size,)),
        })
    fc_dims = [(hidden_size, hidden_size), (hidden_size, hidden_size),
               (hidden_size, output_size)]
    for (din, dout) in fc_dims:
        params["fc"].append({"w": u(next(keys), (dout, din)),   # [out, in]
                             "b": u(next(keys), (dout,))})
    return params


def prepare_params(params, compute_dtype=jnp.bfloat16):
    """PyTorch layout -> kernel layout: per-gate transposed weights (bf16 for the
    MXU), pre-summed r/z biases, all biases as f32 [1, H] rows."""
    hidden = params["gru"][0]["w_hh"].shape[1]
    gru = []
    for p in params["gru"]:
        w_ir, w_iz, w_in = jnp.split(p["w_ih"], 3, axis=0)       # each [H, in]
        w_hr, w_hz, w_hn = jnp.split(p["w_hh"], 3, axis=0)       # each [H, H]
        b_ir, b_iz, b_in = jnp.split(p["b_ih"], 3)
        b_hr, b_hz, b_hn = jnp.split(p["b_hh"], 3)
        gru.append({
            "w_ir": w_ir.T.astype(compute_dtype),
            "w_iz": w_iz.T.astype(compute_dtype),
            "w_in": w_in.T.astype(compute_dtype),
            "w_hr": w_hr.T.astype(compute_dtype),
            "w_hz": w_hz.T.astype(compute_dtype),
            "w_hn": w_hn.T.astype(compute_dtype),
            "b_r": (b_ir + b_hr).reshape(1, hidden).astype(jnp.float32),
            "b_z": (b_iz + b_hz).reshape(1, hidden).astype(jnp.float32),
            "b_in": b_in.reshape(1, hidden).astype(jnp.float32),
            "b_hn": b_hn.reshape(1, hidden).astype(jnp.float32),
        })
    fc = []
    for p in params["fc"]:
        fc.append((p["w"].T.astype(compute_dtype),
                   p["b"].reshape(1, -1).astype(jnp.float32)))
    return {"gru": gru, "fc": fc}


# -----------------------------------------------------------------------------
# Demo
# -----------------------------------------------------------------------------
if __name__ == "__main__":
    input_size = 16
    hidden_size = 32
    num_layers = 2
    output_size = 8
    batch = 4

    key = jax.random.PRNGKey(0)
    k_params, k_x, k_h = jax.random.split(key, 3)

    raw_params = init_params(k_params, input_size, hidden_size, num_layers,
                             output_size)
    kparams = prepare_params(raw_params, compute_dtype=jnp.bfloat16)
    x = jax.random.normal(k_x, (batch, input_size), jnp.float32)

    fwd = jax.jit(my_gru_forward)

    # state=None path (matches MyGRU.forward default): zero-h fast kernel.
    out = jax.block_until_ready(fwd(kparams, x))
    assert out.shape == (batch, output_size), out.shape
    assert bool(jnp.all(jnp.isfinite(out)))

    # Explicit non-zero initial state path (general kernel).
    h0 = jax.random.normal(k_h, (num_layers, batch, hidden_size), jnp.float32)
    out2 = jax.block_until_ready(fwd(kparams, x, h0))
    assert out2.shape == (batch, output_size), out2.shape
    assert bool(jnp.all(jnp.isfinite(out2)))

    print("KERNEL_OK")
</pallas_src>

<mosaic_0001>
module attributes {stable_mosaic.version = 11 : i64} {
  func.func @kernel(%arg0: i32, %arg1: memref<4x16xf32, #tpu.memory_space<vmem>>, %arg2: memref<16x32xbf16, #tpu.memory_space<vmem>>, %arg3: memref<16x32xbf16, #tpu.memory_space<vmem>>, %arg4: memref<16x32xbf16, #tpu.memory_space<vmem>>, %arg5: memref<1x32xf32, #tpu.memory_space<vmem>>, %arg6: memref<1x32xf32, #tpu.memory_space<vmem>>, %arg7: memref<1x32xf32, #tpu.memory_space<vmem>>, %arg8: memref<1x32xf32, #tpu.memory_space<vmem>>, %arg9: memref<32x32xbf16, #tpu.memory_space<vmem>>, %arg10: memref<32x32xbf16, #tpu.memory_space<vmem>>, %arg11: memref<32x32xbf16, #tpu.memory_space<vmem>>, %arg12: memref<1x32xf32, #tpu.memory_space<vmem>>, %arg13: memref<1x32xf32, #tpu.memory_space<vmem>>, %arg14: memref<1x32xf32, #tpu.memory_space<vmem>>, %arg15: memref<1x32xf32, #tpu.memory_space<vmem>>, %arg16: memref<32x32xbf16, #tpu.memory_space<vmem>>, %arg17: memref<1x32xf32, #tpu.memory_space<vmem>>, %arg18: memref<32x32xbf16, #tpu.memory_space<vmem>>, %arg19: memref<1x32xf32, #tpu.memory_space<vmem>>, %arg20: memref<32x8xbf16, #tpu.memory_space<vmem>>, %arg21: memref<1x8xf32, #tpu.memory_space<vmem>>, %arg22: memref<4x8xf32, #tpu.memory_space<vmem>>) attributes {dimension_semantics = [#tpu.dimension_semantics<parallel>], iteration_bounds = array<i64: 1>, scalar_prefetch = 0 : i64, scratch_operands = 0 : i64, tpu.core_type = #tpu.core_type<tc>, window_params = [{transform_indices = @transform_0, window_bounds = array<i64: 4, 16>}, {pipeline_mode = #tpu.pipeline_mode<synchronous>, transform_indices = @transform_1, window_bounds = array<i64: 16, 32>}, {pipeline_mode = #tpu.pipeline_mode<synchronous>, transform_indices = @transform_2, window_bounds = array<i64: 16, 32>}, {pipeline_mode = #tpu.pipeline_mode<synchronous>, transform_indices = @transform_3, window_bounds = array<i64: 16, 32>}, {pipeline_mode = #tpu.pipeline_mode<synchronous>, transform_indices = @transform_4, window_bounds = array<i64: 1, 32>}, {pipeline_mode = #tpu.pipeline_mode<synchronous>, transform_indices = @transform_5, window_bounds = array<i64: 1, 32>}, {pipeline_mode = #tpu.pipeline_mode<synchronous>, transform_indices = @transform_6, window_bounds = array<i64: 1, 32>}, {pipeline_mode = #tpu.pipeline_mode<synchronous>, transform_indices = @transform_7, window_bounds = array<i64: 1, 32>}, {pipeline_mode = #tpu.pipeline_mode<synchronous>, transform_indices = @transform_8, window_bounds = array<i64: 32, 32>}, {pipeline_mode = #tpu.pipeline_mode<synchronous>, transform_indices = @transform_9, window_bounds = array<i64: 32, 32>}, {pipeline_mode = #tpu.pipeline_mode<synchronous>, transform_indices = @transform_10, window_bounds = array<i64: 32, 32>}, {pipeline_mode = #tpu.pipeline_mode<synchronous>, transform_indices = @transform_11, window_bounds = array<i64: 1, 32>}, {pipeline_mode = #tpu.pipeline_mode<synchronous>, transform_indices = @transform_12, window_bounds = array<i64: 1, 32>}, {pipeline_mode = #tpu.pipeline_mode<synchronous>, transform_indices = @transform_13, window_bounds = array<i64: 1, 32>}, {pipeline_mode = #tpu.pipeline_mode<synchronous>, transform_indices = @transform_14, window_bounds = array<i64: 1, 32>}, {pipeline_mode = #tpu.pipeline_mode<synchronous>, transform_indices = @transform_15, window_bounds = array<i64: 32, 32>}, {pipeline_mode = #tpu.pipeline_mode<synchronous>, transform_indices = @transform_16, window_bounds = array<i64: 1, 32>}, {pipeline_mode = #tpu.pipeline_mode<synchronous>, transform_indices = @transform_17, window_bounds = array<i64: 32, 32>}, {pipeline_mode = #tpu.pipeline_mode<synchronous>, transform_indices = @transform_18, window_bounds = array<i64: 1, 32>}, {pipeline_mode = #tpu.pipeline_mode<synchronous>, transform_indices = @transform_19, window_bounds = array<i64: 32, 8>}, {pipeline_mode = #tpu.pipeline_mode<synchronous>, transform_indices = @transform_20, window_bounds = array<i64: 1, 8>}, {transform_indices = @transform_21, window_bounds = array<i64: 4, 8>}]} {
    %c0 = arith.constant 0 : index
    %c0_0 = arith.constant 0 : index
    %0 = vector.load %arg1[%c0, %c0_0] : memref<4x16xf32, #tpu.memory_space<vmem>>, vector<4x16xf32>
    %c0_1 = arith.constant 0 : index
    %c0_2 = arith.constant 0 : index
    %1 = vector.load %arg2[%c0_1, %c0_2] : memref<16x32xbf16, #tpu.memory_space<vmem>>, vector<16x32xbf16>
    %c0_3 = arith.constant 0 : index
    %c0_4 = arith.constant 0 : index
    %2 = vector.load %arg3[%c0_3, %c0_4] : memref<16x32xbf16, #tpu.memory_space<vmem>>, vector<16x32xbf16>
    %c0_5 = arith.constant 0 : index
    %c0_6 = arith.constant 0 : index
    %3 = vector.load %arg4[%c0_5, %c0_6] : memref<16x32xbf16, #tpu.memory_space<vmem>>, vector<16x32xbf16>
    %c0_7 = arith.constant 0 : index
    %c0_8 = arith.constant 0 : index
    %4 = vector.load %arg5[%c0_7, %c0_8] : memref<1x32xf32, #tpu.memory_space<vmem>>, vector<1x32xf32>
    %c0_9 = arith.constant 0 : index
    %c0_10 = arith.constant 0 : index
    %5 = vector.load %arg6[%c0_9, %c0_10] : memref<1x32xf32, #tpu.memory_space<vmem>>, vector<1x32xf32>
    %c0_11 = arith.constant 0 : index
    %c0_12 = arith.constant 0 : index
    %6 = vector.load %arg7[%c0_11, %c0_12] : memref<1x32xf32, #tpu.memory_space<vmem>>, vector<1x32xf32>
    %c0_13 = arith.constant 0 : index
    %c0_14 = arith.constant 0 : index
    %7 = vector.load %arg8[%c0_13, %c0_14] : memref<1x32xf32, #tpu.memory_space<vmem>>, vector<1x32xf32>
    %8 = arith.truncf %0 : vector<4x16xf32> to vector<4x16xbf16>
    %cst = arith.constant dense<0.000000e+00> : vector<4x32xf32>
    %9 = tpu.matmul %8, %1, %cst {dimension_numbers = #tpu.dot_dimension_numbers<[1], [0], [0], [1], [0, 0, 1, 1], [], []>} : vector<4x16xbf16>, vector<16x32xbf16>, vector<4x32xf32> -> vector<4x32xf32>
    %cst_15 = arith.constant dense<0.000000e+00> : vector<4x32xf32>
    %10 = tpu.matmul %8, %2, %cst_15 {dimension_numbers = #tpu.dot_dimension_numbers<[1], [0], [0], [1], [0, 0, 1, 1], [], []>} : vector<4x16xbf16>, vector<16x32xbf16>, vector<4x32xf32> -> vector<4x32xf32>
    %cst_16 = arith.constant dense<0.000000e+00> : vector<4x32xf32>
    %11 = tpu.matmul %8, %3, %cst_16 {dimension_numbers = #tpu.dot_dimension_numbers<[1], [0], [0], [1], [0, 0, 1, 1], [], []>} : vector<4x16xbf16>, vector<16x32xbf16>, vector<4x32xf32> -> vector<4x32xf32>
    %12 = vector.broadcast %4 : vector<1x32xf32> to vector<4x32xf32>
    %13 = arith.addf %9, %12 : vector<4x32xf32>
    %14 = arith.negf %13 : vector<4x32xf32>
    %15 = math.exp %14 : vector<4x32xf32>
    %cst_17 = arith.constant 1.000000e+00 : f32
    %16 = vector.broadcast %cst_17 : f32 to vector<4x32xf32>
    %17 = arith.addf %16, %15 : vector<4x32xf32>
    %18 = arith.divf %16, %17 : vector<4x32xf32>
    %19 = vector.broadcast %5 : vector<1x32xf32> to vector<4x32xf32>
    %20 = arith.addf %10, %19 : vector<4x32xf32>
    %21 = arith.negf %20 : vector<4x32xf32>
    %22 = math.exp %21 : vector<4x32xf32>
    %cst_18 = arith.constant 1.000000e+00 : f32
    %23 = vector.broadcast %cst_18 : f32 to vector<4x32xf32>
    %24 = arith.addf %23, %22 : vector<4x32xf32>
    %25 = arith.divf %23, %24 : vector<4x32xf32>
    %26 = vector.broadcast %6 : vector<1x32xf32> to vector<4x32xf32>
    %27 = arith.addf %11, %26 : vector<4x32xf32>
    %28 = vector.broadcast %7 : vector<1x32xf32> to vector<4x32xf32>
    %29 = arith.mulf %18, %28 : vector<4x32xf32>
    %30 = arith.addf %27, %29 : vector<4x32xf32>
    %31 = math.tanh %30 : vector<4x32xf32>
    %cst_19 = arith.constant 1.000000e+00 : f32
    %32 = vector.broadcast %cst_19 : f32 to vector<4x32xf32>
    %33 = arith.subf %32, %25 : vector<4x32xf32>
    %34 = arith.mulf %33, %31 : vector<4x32xf32>
    %c0_20 = arith.constant 0 : index
    %c0_21 = arith.constant 0 : index
    %35 = vector.load %arg9[%c0_20, %c0_21] : memref<32x32xbf16, #tpu.memory_space<vmem>>, vector<32x32xbf16>
    %c0_22 = arith.constant 0 : index
    %c0_23 = arith.constant 0 : index
    %36 = vector.load %arg10[%c0_22, %c0_23] : memref<32x32xbf16, #tpu.memory_space<vmem>>, vector<32x32xbf16>
    %c0_24 = arith.constant 0 : index
    %c0_25 = arith.constant 0 : index
    %37 = vector.load %arg11[%c0_24, %c0_25] : memref<32x32xbf16, #tpu.memory_space<vmem>>, vector<32x32xbf16>
    %c0_26 = arith.constant 0 : index
    %c0_27 = arith.constant 0 : index
    %38 = vector.load %arg12[%c0_26, %c0_27] : memref<1x32xf32, #tpu.memory_space<vmem>>, vector<1x32xf32>
    %c0_28 = arith.constant 0 : index
    %c0_29 = arith.constant 0 : index
    %39 = vector.load %arg13[%c0_28, %c0_29] : memref<1x32xf32, #tpu.memory_space<vmem>>, vector<1x32xf32>
    %c0_30 = arith.constant 0 : index
    %c0_31 = arith.constant 0 : index
    %40 = vector.load %arg14[%c0_30, %c0_31] : memref<1x32xf32, #tpu.memory_space<vmem>>, vector<1x32xf32>
    %c0_32 = arith.constant 0 : index
    %c0_33 = arith.constant 0 : index
    %41 = vector.load %arg15[%c0_32, %c0_33] : memref<1x32xf32, #tpu.memory_space<vmem>>, vector<1x32xf32>
    %42 = arith.truncf %34 : vector<4x32xf32> to vector<4x32xbf16>
    %cst_34 = arith.constant dense<0.000000e+00> : vector<4x32xf32>
    %43 = tpu.matmul %42, %35, %cst_34 {dimension_numbers = #tpu.dot_dimension_numbers<[1], [0], [0], [1], [0, 0, 1, 1], [], []>} : vector<4x32xbf16>, vector<32x32xbf16>, vector<4x32xf32> -> vector<4x32xf32>
    %cst_35 = arith.constant dense<0.000000e+00> : vector<4x32xf32>
    %44 = tpu.matmul %42, %36, %cst_35 {dimension_numbers = #tpu.dot_dimension_numbers<[1], [0], [0], [1], [0, 0, 1, 1], [], []>} : vector<4x32xbf16>, vector<32x32xbf16>, vector<4x32xf32> -> vector<4x32xf32>
    %cst_36 = arith.constant dense<0.000000e+00> : vector<4x32xf32>
    %45 = tpu.matmul %42, %37, %cst_36 {dimension_numbers = #tpu.dot_dimension_numbers<[1], [0], [0], [1], [0, 0, 1, 1], [], []>} : vector<4x32xbf16>, vector<32x32xbf16>, vector<4x32xf32> -> vector<4x32xf32>
    %46 = vector.broadcast %38 : vector<1x32xf32> to vector<4x32xf32>
    %47 = arith.addf %43, %46 : vector<4x32xf32>
    %48 = arith.negf %47 : vector<4x32xf32>
    %49 = math.exp %48 : vector<4x32xf32>
    %cst_37 = arith.constant 1.000000e+00 : f32
    %50 = vector.broadcast %cst_37 : f32 to vector<4x32xf32>
    %51 = arith.addf %50, %49 : vector<4x32xf32>
    %52 = arith.divf %50, %51 : vector<4x32xf32>
    %53 = vector.broadcast %39 : vector<1x32xf32> to vector<4x32xf32>
    %54 = arith.addf %44, %53 : vector<4x32xf32>
    %55 = arith.negf %54 : vector<4x32xf32>
    %56 = math.exp %55 : vector<4x32xf32>
    %cst_38 = arith.constant 1.000000e+00 : f32
    %57 = vector.broadcast %cst_38 : f32 to vector<4x32xf32>
    %58 = arith.addf %57, %56 : vector<4x32xf32>
    %59 = arith.divf %57, %58 : vector<4x32xf32>
    %60 = vector.broadcast %40 : vector<1x32xf32> to vector<4x32xf32>
    %61 = arith.addf %45, %60 : vector<4x32xf32>
    %62 = vector.broadcast %41 : vector<1x32xf32> to vector<4x32xf32>
    %63 = arith.mulf %52, %62 : vector<4x32xf32>
    %64 = arith.addf %61, %63 : vector<4x32xf32>
    %65 = math.tanh %64 : vector<4x32xf32>
    %cst_39 = arith.constant 1.000000e+00 : f32
    %66 = vector.broadcast %cst_39 : f32 to vector<4x32xf32>
    %67 = arith.subf %66, %59 : vector<4x32xf32>
    %68 = arith.mulf %67, %65 : vector<4x32xf32>
    %c0_40 = arith.constant 0 : index
    %c0_41 = arith.constant 0 : index
    %69 = vector.load %arg16[%c0_40, %c0_41] : memref<32x32xbf16, #tpu.memory_space<vmem>>, vector<32x32xbf16>
    %c0_42 = arith.constant 0 : index
    %c0_43 = arith.constant 0 : index
    %70 = vector.load %arg17[%c0_42, %c0_43] : memref<1x32xf32, #tpu.memory_space<vmem>>, vector<1x32xf32>
    %c0_44 = arith.constant 0 : index
    %c0_45 = arith.constant 0 : index
    %71 = vector.load %arg18[%c0_44, %c0_45] : memref<32x32xbf16, #tpu.memory_space<vmem>>, vector<32x32xbf16>
    %c0_46 = arith.constant 0 : index
    %c0_47 = arith.constant 0 : index
    %72 = vector.load %arg19[%c0_46, %c0_47] : memref<1x32xf32, #tpu.memory_space<vmem>>, vector<1x32xf32>
    %c0_48 = arith.constant 0 : index
    %c0_49 = arith.constant 0 : index
    %73 = vector.load %arg20[%c0_48, %c0_49] : memref<32x8xbf16, #tpu.memory_space<vmem>>, vector<32x8xbf16>
    %c0_50 = arith.constant 0 : index
    %c0_51 = arith.constant 0 : index
    %74 = vector.load %arg21[%c0_50, %c0_51] : memref<1x8xf32, #tpu.memory_space<vmem>>, vector<1x8xf32>
    %75 = arith.truncf %68 : vector<4x32xf32> to vector<4x32xbf16>
    %cst_52 = arith.constant dense<0.000000e+00> : vector<4x32xf32>
    %76 = tpu.matmul %75, %69, %cst_52 {dimension_numbers = #tpu.dot_dimension_numbers<[1], [0], [0], [1], [0, 0, 1, 1], [], []>} : vector<4x32xbf16>, vector<32x32xbf16>, vector<4x32xf32> -> vector<4x32xf32>
    %77 = vector.broadcast %70 : vector<1x32xf32> to vector<4x32xf32>
    %78 = arith.addf %76, %77 : vector<4x32xf32>
    %cst_53 = arith.constant 0.000000e+00 : f32
    %79 = vector.broadcast %cst_53 : f32 to vector<4x32xf32>
    %80 = arith.maximumf %78, %79 : vector<4x32xf32>
    %81 = arith.truncf %80 : vector<4x32xf32> to vector<4x32xbf16>
    %cst_54 = arith.constant dense<0.000000e+00> : vector<4x32xf32>
    %82 = tpu.matmul %81, %71, %cst_54 {dimension_numbers = #tpu.dot_dimension_numbers<[1], [0], [0], [1], [0, 0, 1, 1], [], []>} : vector<4x32xbf16>, vector<32x32xbf16>, vector<4x32xf32> -> vector<4x32xf32>
    %83 = vector.broadcast %72 : vector<1x32xf32> to vector<4x32xf32>
    %84 = arith.addf %82, %83 : vector<4x32xf32>
    %cst_55 = arith.constant 0.000000e+00 : f32
    %85 = vector.broadcast %cst_55 : f32 to vector<4x32xf32>
    %86 = arith.maximumf %84, %85 : vector<4x32xf32>
    %87 = arith.truncf %86 : vector<4x32xf32> to vector<4x32xbf16>
    %cst_56 = arith.constant dense<0.000000e+00> : vector<4x8xf32>
    %88 = tpu.matmul %87, %73, %cst_56 {dimension_numbers = #tpu.dot_dimension_numbers<[1], [0], [0], [1], [0, 0, 1, 1], [], []>} : vector<4x32xbf16>, vector<32x8xbf16>, vector<4x8xf32> -> vector<4x8xf32>
    %89 = vector.broadcast %74 : vector<1x8xf32> to vector<4x8xf32>
    %90 = arith.addf %88, %89 : vector<4x8xf32>
    %c0_57 = arith.constant 0 : index
    %c0_58 = arith.constant 0 : index
    %91 = vector.load %arg22[%c0_57, %c0_58] : memref<4x8xf32, #tpu.memory_space<vmem>>, vector<4x8xf32>
    tpu.vector_store %arg22[%c0_57, %c0_58], %90 {strides = array<i32>} : memref<4x8xf32, #tpu.memory_space<vmem>>, vector<4x8xf32>,
    return
  }
  func.func @transform_0(%arg0: i32) -> (i32, i32) {
    %c0_i32 = arith.constant 0 : i32
    %c0_i32_0 = arith.constant 0 : i32
    return %arg0, %c0_i32 : i32, i32
  }
  func.func @transform_1(%arg0: i32) -> (i32, i32) {
    %c0_i32 = arith.constant 0 : i32
    %c0_i32_0 = arith.constant 0 : i32
    %c0_i32_1 = arith.constant 0 : i32
    return %c0_i32, %c0_i32_0 : i32, i32
  }
  func.func @transform_2(%arg0: i32) -> (i32, i32) {
    %c0_i32 = arith.constant 0 : i32
    %c0_i32_0 = arith.constant 0 : i32
    %c0_i32_1 = arith.constant 0 : i32
    return %c0_i32, %c0_i32_0 : i32, i32
  }
  func.func @transform_3(%arg0: i32) -> (i32, i32) {
    %c0_i32 = arith.constant 0 : i32
    %c0_i32_0 = arith.constant 0 : i32
    %c0_i32_1 = arith.constant 0 : i32
    return %c0_i32, %c0_i32_0 : i32, i32
  }
  func.func @transform_4(%arg0: i32) -> (i32, i32) {
    %c0_i32 = arith.constant 0 : i32
    %c0_i32_0 = arith.constant 0 : i32
    %c0_i32_1 = arith.constant 0 : i32
    return %c0_i32, %c0_i32_0 : i32, i32
  }
  func.func @transform_5(%arg0: i32) -> (i32, i32) {
    %c0_i32 = arith.constant 0 : i32
    %c0_i32_0 = arith.constant 0 : i32
    %c0_i32_1 = arith.constant 0 : i32
    return %c0_i32, %c0_i32_0 : i32, i32
  }
  func.func @transform_6(%arg0: i32) -> (i32, i32) {
    %c0_i32 = arith.constant 0 : i32
    %c0_i32_0 = arith.constant 0 : i32
    %c0_i32_1 = arith.constant 0 : i32
    return %c0_i32, %c0_i32_0 : i32, i32
  }
  func.func @transform_7(%arg0: i32) -> (i32, i32) {
    %c0_i32 = arith.constant 0 : i32
    %c0_i32_0 = arith.constant 0 : i32
    %c0_i32_1 = arith.constant 0 : i32
    return %c0_i32, %c0_i32_0 : i32, i32
  }
  func.func @transform_8(%arg0: i32) -> (i32, i32) {
    %c0_i32 = arith.constant 0 : i32
    %c0_i32_0 = arith.constant 0 : i32
    %c0_i32_1 = arith.constant 0 : i32
    return %c0_i32, %c0_i32_0 : i32, i32
  }
  func.func @transform_9(%arg0: i32) -> (i32, i32) {
    %c0_i32 = arith.constant 0 : i32
    %c0_i32_0 = arith.constant 0 : i32
    %c0_i32_1 = arith.constant 0 : i32
    return %c0_i32, %c0_i32_0 : i32, i32
  }
  func.func @transform_10(%arg0: i32) -> (i32, i32) {
    %c0_i32 = arith.constant 0 : i32
    %c0_i32_0 = arith.constant 0 : i32
    %c0_i32_1 = arith.constant 0 : i32
    return %c0_i32, %c0_i32_0 : i32, i32
  }
  func.func @transform_11(%arg0: i32) -> (i32, i32) {
    %c0_i32 = arith.constant 0 : i32
    %c0_i32_0 = arith.constant 0 : i32
    %c0_i32_1 = arith.constant 0 : i32
    return %c0_i32, %c0_i32_0 : i32, i32
  }
  func.func @transform_12(%arg0: i32) -> (i32, i32) {
    %c0_i32 = arith.constant 0 : i32
    %c0_i32_0 = arith.constant 0 : i32
    %c0_i32_1 = arith.constant 0 : i32
    return %c0_i32, %c0_i32_0 : i32, i32
  }
  func.func @transform_13(%arg0: i32) -> (i32, i32) {
    %c0_i32 = arith.constant 0 : i32
    %c0_i32_0 = arith.constant 0 : i32
    %c0_i32_1 = arith.constant 0 : i32
    return %c0_i32, %c0_i32_0 : i32, i32
  }
  func.func @transform_14(%arg0: i32) -> (i32, i32) {
    %c0_i32 = arith.constant 0 : i32
    %c0_i32_0 = arith.constant 0 : i32
    %c0_i32_1 = arith.constant 0 : i32
    return %c0_i32, %c0_i32_0 : i32, i32
  }
  func.func @transform_15(%arg0: i32) -> (i32, i32) {
    %c0_i32 = arith.constant 0 : i32
    %c0_i32_0 = arith.constant 0 : i32
    %c0_i32_1 = arith.constant 0 : i32
    return %c0_i32, %c0_i32_0 : i32, i32
  }
  func.func @transform_16(%arg0: i32) -> (i32, i32) {
    %c0_i32 = arith.constant 0 : i32
    %c0_i32_0 = arith.constant 0 : i32
    %c0_i32_1 = arith.constant 0 : i32
    return %c0_i32, %c0_i32_0 : i32, i32
  }
  func.func @transform_17(%arg0: i32) -> (i32, i32) {
    %c0_i32 = arith.constant 0 : i32
    %c0_i32_0 = arith.constant 0 : i32
    %c0_i32_1 = arith.constant 0 : i32
    return %c0_i32, %c0_i32_0 : i32, i32
  }
  func.func @transform_18(%arg0: i32) -> (i32, i32) {
    %c0_i32 = arith.constant 0 : i32
    %c0_i32_0 = arith.constant 0 : i32
    %c0_i32_1 = arith.constant 0 : i32
    return %c0_i32, %c0_i32_0 : i32, i32
  }
  func.func @transform_19(%arg0: i32) -> (i32, i32) {
    %c0_i32 = arith.constant 0 : i32
    %c0_i32_0 = arith.constant 0 : i32
    %c0_i32_1 = arith.constant 0 : i32
    return %c0_i32, %c0_i32_0 : i32, i32
  }
  func.func @transform_20(%arg0: i32) -> (i32, i32) {
    %c0_i32 = arith.constant 0 : i32
    %c0_i32_0 = arith.constant 0 : i32
    %c0_i32_1 = arith.constant 0 : i32
    return %c0_i32, %c0_i32_0 : i32, i32
  }
  func.func @transform_21(%arg0: i32) -> (i32, i32) {
    %c0_i32 = arith.constant 0 : i32
    %c0_i32_0 = arith.constant 0 : i32
    return %arg0, %c0_i32 : i32, i32
  }
}

</mosaic_0001>

<llo_original>
// kernel: my_gru_forward.1
$region0: #{my_gru_forward.1}
  #allocation0 [shape = 'u32[]', space=smem, size = 0x4, offset = 0x4, fixed_abs, tag = 'smem constant byte address 0x4 - core index']
  #allocation1 [shape = 'u32[72,128]{1,0:T(1,128)}', space=vmem, size = 0x9000, scoped, tag = 'internal scratch']
  %s0 = inlined_call_operand.vmem [shape: f32[4,16], index: 0, kind: input, shape index: {}]
  %s1 = inlined_call_operand.hbm [shape: bf16[16,32], index: 1, kind: input, shape index: {}]
  %s2 = inlined_call_operand.hbm [shape: bf16[16,32], index: 2, kind: input, shape index: {}]
  %s3 = inlined_call_operand.hbm [shape: bf16[16,32], index: 3, kind: input, shape index: {}]
  %s4 = inlined_call_operand.hbm [shape: f32[1,32], index: 4, kind: input, shape index: {}]
  %s5 = inlined_call_operand.hbm [shape: f32[1,32], index: 5, kind: input, shape index: {}]
  %s6 = inlined_call_operand.hbm [shape: f32[1,32], index: 6, kind: input, shape index: {}]
  %s7 = inlined_call_operand.hbm [shape: f32[1,32], index: 7, kind: input, shape index: {}]
  %s8 = inlined_call_operand.vmem [shape: bf16[32,32], index: 8, kind: input, shape index: {}]
  %s9 = inlined_call_operand.vmem [shape: bf16[32,32], index: 9, kind: input, shape index: {}]
  %s10 = inlined_call_operand.hbm [shape: bf16[32,32], index: 10, kind: input, shape index: {}]
  %s11 = inlined_call_operand.hbm [shape: f32[1,32], index: 11, kind: input, shape index: {}]
  %s12 = inlined_call_operand.hbm [shape: f32[1,32], index: 12, kind: input, shape index: {}]
  %s13 = inlined_call_operand.hbm [shape: f32[1,32], index: 13, kind: input, shape index: {}]
  %s14 = inlined_call_operand.hbm [shape: f32[1,32], index: 14, kind: input, shape index: {}]
  %s15 = inlined_call_operand.hbm [shape: bf16[32,32], index: 15, kind: input, shape index: {}]
  %s16 = inlined_call_operand.hbm [shape: f32[1,32], index: 16, kind: input, shape index: {}]
  %s17 = inlined_call_operand.hbm [shape: bf16[32,32], index: 17, kind: input, shape index: {}]
  %s18 = inlined_call_operand.hbm [shape: f32[1,32], index: 18, kind: input, shape index: {}]
  %s19 = inlined_call_operand.vmem [shape: bf16[32,8], index: 19, kind: input, shape index: {}]
  %s20 = inlined_call_operand.hbm [shape: f32[1,8], index: 20, kind: input, shape index: {}]
  %s21 = inlined_call_operand.hbm [shape: f32[4,8], index: 21, kind: output, shape index: {}]
  %s22 = sld [smem:[#allocation0]]
  $region162: #{my_gru_forward.1} parent=0
    _
  %s24 = ssub.s32 1, %s22
  %s25 = scalar_select 0, %s24, %s22
  $region1: #{my_gru_forward.1} parent=0
    #allocation2 [shape = 'u8[4096]{0}', space=vmem, size = 0x1000, scoped, tag = 'input window, operand 1, single buffered']
    #allocation3 [shape = 's32[1]{0}', space=sflag, size = 0x4, scoped, tag = 'scoped memory for my_gru_forward.1']
    #allocation4 [shape = 's32[1]{0}', space=sflag, size = 0x4, scoped, tag = 'scoped memory for my_gru_forward.1']
    #allocation5 [shape = 'u8[4096]{0}', space=vmem, size = 0x1000, scoped, tag = 'input window, operand 2, single buffered']
    #allocation6 [shape = 's32[1]{0}', space=sflag, size = 0x4, scoped, tag = 'scoped memory for my_gru_forward.1']
    #allocation7 [shape = 'u8[4096]{0}', space=vmem, size = 0x1000, scoped, tag = 'input window, operand 3, single buffered']
    #allocation8 [shape = 'u8[512]{0}', space=vmem, size = 0x400, scoped, tag = 'input window, operand 4, single buffered']
    #allocation9 [shape = 's32[1]{0}', space=sflag, size = 0x4, scoped, tag = 'scoped memory for my_gru_forward.1']
    #allocation10 [shape = 'u8[512]{0}', space=vmem, size = 0x400, scoped, tag = 'input window, operand 5, single buffered']
    #allocation11 [shape = 'u8[512]{0}', space=vmem, size = 0x400, scoped, tag = 'input window, operand 6, single buffered']
    #allocation12 [shape = 's32[1]{0}', space=sflag, size = 0x4, scoped, tag = 'scoped memory for my_gru_forward.1']
    #allocation13 [shape = 'u8[512]{0}', space=vmem, size = 0x400, scoped, tag = 'input window, operand 7, single buffered']
    #allocation14 [shape = 'u8[8192]{0}', space=vmem, size = 0x2000, scoped, tag = 'input window, operand 10, single buffered']
    #allocation15 [shape = 's32[1]{0}', space=sflag, size = 0x4, scoped, tag = 'scoped memory for my_gru_forward.1']
    #allocation16 [shape = 'u8[512]{0}', space=vmem, size = 0x400, scoped, tag = 'input window, operand 11, single buffered']
    #allocation17 [shape = 'u8[512]{0}', space=vmem, size = 0x400, scoped, tag = 'input window, operand 12, single buffered']
    #allocation18 [shape = 's32[1]{0}', space=sflag, size = 0x4, scoped, tag = 'scoped memory for my_gru_forward.1']
    #allocation19 [shape = 'u8[512]{0}', space=vmem, size = 0x400, scoped, tag = 'input window, operand 13, single buffered']
    #allocation20 [shape = 'u8[512]{0}', space=vmem, size = 0x400, scoped, tag = 'input window, operand 14, single buffered']
    #allocation21 [shape = 's32[1]{0}', space=sflag, size = 0x4, scoped, tag = 'scoped memory for my_gru_forward.1']
    #allocation22 [shape = 'u8[8192]{0}', space=vmem, size = 0x2000, scoped, tag = 'input window, operand 15, single buffered']
    #allocation23 [shape = 'u8[512]{0}', space=vmem, size = 0x400, scoped, tag = 'input window, operand 16, single buffered']
    #allocation24 [shape = 's32[1]{0}', space=sflag, size = 0x4, scoped, tag = 'scoped memory for my_gru_forward.1']
    #allocation25 [shape = 'u8[8192]{0}', space=vmem, size = 0x2000, scoped, tag = 'input window, operand 17, single buffered']
    #allocation26 [shape = 'u8[512]{0}', space=vmem, size = 0x400, scoped, tag = 'input window, operand 18, single buffered']
    #allocation27 [shape = 's32[1]{0}', space=sflag, size = 0x4, scoped, tag = 'scoped memory for my_gru_forward.1']
    #allocation28 [shape = 'u8[512]{0}', space=vmem, size = 0x400, scoped, tag = 'input window, operand 20, single buffered']
    #allocation29 [shape = 'u8[2048]{0}', space=vmem, size = 0x800, scoped, tag = 'output window, operand 0, single buffered']
    %26 = vsyncpa [#allocation3], 0
    %27 = vsyncpa [#allocation6], 0
    %28 = vsyncpa [#allocation9], 0
    %29 = vsyncpa [#allocation12], 0
    %30 = vsyncpa [#allocation15], 0
    %31 = vsyncpa [#allocation18], 0
    %32 = vsyncpa [#allocation21], 0
    %33 = vsyncpa [#allocation24], 0
    %34 = vsyncpa [#allocation27], 0
    %35 = vsyncpa [#allocation4], 0
    // Predicated region
    $region2: #{my_gru_forward.1} parent=1 // pred_check
      _
    $region3: #{my_gru_forward.1} parent=1 // pred_check_branch
      %37 = sbr.rel (0) target = $region5
    $region4: #{my_gru_forward.1} parent=1 // pred_region
      _
    $region5: #{my_gru_forward.1} parent=1 // pred_fallthru
      _
    // Predicated region
    $region6: #{my_gru_forward.1} parent=1 // pred_check
      _
    $region7: #{my_gru_forward.1} parent=1 // pred_check_branch
      %39 = sbr.rel (0) target = $region9
    $region8: #{my_gru_forward.1} parent=1 // pred_region
      %41 = vsyncadd [#allocation3], 0
      %s42 = sshll.u32 %s1, 4
      %s43 = int_to_ptr.hbm [resolvable:$true] %s42
      %s44 = sshll.u32 [#allocation2], 4
      %s45 = int_to_ptr.vmem [resolvable:$true] %s44
      %50 = dma.hbm_to_vmem [thread:$0]  %s43, 128, %s45, [#allocation3], 64, 64, 4
    $region9: #{my_gru_forward.1} parent=1 // pred_fallthru
      _
    // Predicated region
    $region10: #{my_gru_forward.1} parent=1 // pred_check
      _
    $region11: #{my_gru_forward.1} parent=1 // pred_check_branch
      %52 = sbr.rel (0) target = $region13
    $region12: #{my_gru_forward.1} parent=1 // pred_region
      %54 = vsyncadd [#allocation6], 0
      %s55 = sshll.u32 %s2, 4
      %s56 = int_to_ptr.hbm [resolvable:$true] %s55
      %s57 = sshll.u32 [#allocation5], 4
      %s58 = int_to_ptr.vmem [resolvable:$true] %s57
      %63 = dma.hbm_to_vmem [thread:$0]  %s56, 128, %s58, [#allocation6], 64, 64, 4
    $region13: #{my_gru_forward.1} parent=1 // pred_fallthru
      _
    // Predicated region
    $region14: #{my_gru_forward.1} parent=1 // pred_check
      _
    $region15: #{my_gru_forward.1} parent=1 // pred_check_branch
      %65 = sbr.rel (0) target = $region17
    $region16: #{my_gru_forward.1} parent=1 // pred_region
      %67 = vsyncadd [#allocation6], 0
      %s68 = sshll.u32 %s3, 4
      %s69 = int_to_ptr.hbm [resolvable:$true] %s68
      %s70 = sshll.u32 [#allocation7], 4
      %s71 = int_to_ptr.vmem [resolvable:$true] %s70
      %76 = dma.hbm_to_vmem [thread:$0]  %s69, 128, %s71, [#allocation6], 64, 64, 4
    $region17: #{my_gru_forward.1} parent=1 // pred_fallthru
      _
    // Predicated region
    $region18: #{my_gru_forward.1} parent=1 // pred_check
      _
    $region19: #{my_gru_forward.1} parent=1 // pred_check_branch
      %78 = sbr.rel (0) target = $region21
    $region20: #{my_gru_forward.1} parent=1 // pred_region
      %80 = vsyncadd [#allocation9], 0
      %s82 = sshll.u32 %s4, 4
      %s83 = int_to_ptr.hbm [resolvable:$true] %s82
      %s84 = sshll.u32 [#allocation8], 4
      %s85 = int_to_ptr.vmem [resolvable:$true] %s84
      %87 = dma.hbm_to_vmem [thread:$0]  %s83, 16, %s85, [#allocation9]
    $region21: #{my_gru_forward.1} parent=1 // pred_fallthru
      _
    // Predicated region
    $region22: #{my_gru_forward.1} parent=1 // pred_check
      _
    $region23: #{my_gru_forward.1} parent=1 // pred_check_branch
      %89 = sbr.rel (0) target = $region25
    $region24: #{my_gru_forward.1} parent=1 // pred_region
      %91 = vsyncadd [#allocation9], 0
      %s93 = sshll.u32 %s5, 4
      %s94 = int_to_ptr.hbm [resolvable:$true] %s93
      %s95 = sshll.u32 [#allocation10], 4
      %s96 = int_to_ptr.vmem [resolvable:$true] %s95
      %98 = dma.hbm_to_vmem [thread:$0]  %s94, 16, %s96, [#allocation9]
    $region25: #{my_gru_forward.1} parent=1 // pred_fallthru
      _
    // Predicated region
    $region26: #{my_gru_forward.1} parent=1 // pred_check
      _
    $region27: #{my_gru_forward.1} parent=1 // pred_check_branch
      %100 = sbr.rel (0) target = $region29
    $region28: #{my_gru_forward.1} parent=1 // pred_region
      %102 = vsyncadd [#allocation12], 0
      %s104 = sshll.u32 %s6, 4
      %s105 = int_to_ptr.hbm [resolvable:$true] %s104
      %s106 = sshll.u32 [#allocation11], 4
      %s107 = int_to_ptr.vmem [resolvable:$true] %s106
      %109 = dma.hbm_to_vmem [thread:$0]  %s105, 16, %s107, [#allocation12]
    $region29: #{my_gru_forward.1} parent=1 // pred_fallthru
      _
    // Predicated region
    $region30: #{my_gru_forward.1} parent=1 // pred_check
      _
    $region31: #{my_gru_forward.1} parent=1 // pred_check_branch
      %111 = sbr.rel (0) target = $region33
    $region32: #{my_gru_forward.1} parent=1 // pred_region
      %113 = vsyncadd [#allocation12], 0
      %s115 = sshll.u32 %s7, 4
      %s116 = int_to_ptr.hbm [resolvable:$true] %s115
      %s117 = sshll.u32 [#allocation13], 4
      %s118 = int_to_ptr.vmem [resolvable:$true] %s117
      %120 = dma.hbm_to_vmem [thread:$0]  %s116, 16, %s118, [#allocation12]
    $region33: #{my_gru_forward.1} parent=1 // pred_fallthru
      _
    // Predicated region
    $region34: #{my_gru_forward.1} parent=1 // pred_check
      _
    $region35: #{my_gru_forward.1} parent=1 // pred_check_branch
      %122 = sbr.rel (0) target = $region37
    $region36: #{my_gru_forward.1} parent=1 // pred_region
      _
    $region37: #{my_gru_forward.1} parent=1 // pred_fallthru
      _
    // Predicated region
    $region38: #{my_gru_forward.1} parent=1 // pred_check
      _
    $region39: #{my_gru_forward.1} parent=1 // pred_check_branch
      %124 = sbr.rel (0) target = $region41
    $region40: #{my_gru_forward.1} parent=1 // pred_region
      _
    $region41: #{my_gru_forward.1} parent=1 // pred_fallthru
      _
    // Predicated region
    $region42: #{my_gru_forward.1} parent=1 // pred_check
      _
    $region43: #{my_gru_forward.1} parent=1 // pred_check_branch
      %126 = sbr.rel (0) target = $region45
    $region44: #{my_gru_forward.1} parent=1 // pred_region
      %128 = vsyncadd [#allocation15], 0
      %s129 = sshll.u32 %s10, 4
      %s130 = int_to_ptr.hbm [resolvable:$true] %s129
      %s131 = sshll.u32 [#allocation14], 4
      %s132 = int_to_ptr.vmem [resolvable:$true] %s131
      %137 = dma.hbm_to_vmem [thread:$0]  %s130, 256, %s132, [#allocation15], 64, 64, 4
    $region45: #{my_gru_forward.1} parent=1 // pred_fallthru
      _
    // Predicated region
    $region46: #{my_gru_forward.1} parent=1 // pred_check
      _
    $region47: #{my_gru_forward.1} parent=1 // pred_check_branch
      %139 = sbr.rel (0) target = $region49
    $region48: #{my_gru_forward.1} parent=1 // pred_region
      %141 = vsyncadd [#allocation15], 0
      %s143 = sshll.u32 %s11, 4
      %s144 = int_to_ptr.hbm [resolvable:$true] %s143
      %s145 = sshll.u32 [#allocation16], 4
      %s146 = int_to_ptr.vmem [resolvable:$true] %s145
      %148 = dma.hbm_to_vmem [thread:$0]  %s144, 16, %s146, [#allocation15]
    $region49: #{my_gru_forward.1} parent=1 // pred_fallthru
      _
    // Predicated region
    $region50: #{my_gru_forward.1} parent=1 // pred_check
      _
    $region51: #{my_gru_forward.1} parent=1 // pred_check_branch
      %150 = sbr.rel (0) target = $region53
    $region52: #{my_gru_forward.1} parent=1 // pred_region
      %152 = vsyncadd [#allocation18], 0
      %s154 = sshll.u32 %s12, 4
      %s155 = int_to_ptr.hbm [resolvable:$true] %s154
      %s156 = sshll.u32 [#allocation17], 4
      %s157 = int_to_ptr.vmem [resolvable:$true] %s156
      %159 = dma.hbm_to_vmem [thread:$0]  %s155, 16, %s157, [#allocation18]
    $region53: #{my_gru_forward.1} parent=1 // pred_fallthru
      _
    // Predicated region
    $region54: #{my_gru_forward.1} parent=1 // pred_check
      _
    $region55: #{my_gru_forward.1} parent=1 // pred_check_branch
      %161 = sbr.rel (0) target = $region57
    $region56: #{my_gru_forward.1} parent=1 // pred_region
      %163 = vsyncadd [#allocation18], 0
      %s165 = sshll.u32 %s13, 4
      %s166 = int_to_ptr.hbm [resolvable:$true] %s165
      %s167 = sshll.u32 [#allocation19], 4
      %s168 = int_to_ptr.vmem [resolvable:$true] %s167
      %170 = dma.hbm_to_vmem [thread:$0]  %s166, 16, %s168, [#allocation18]
    $region57: #{my_gru_forward.1} parent=1 // pred_fallthru
      _
    // Predicated region
    $region58: #{my_gru_forward.1} parent=1 // pred_check
      _
    $region59: #{my_gru_forward.1} parent=1 // pred_check_branch
      %172 = sbr.rel (0) target = $region61
    $region60: #{my_gru_forward.1} parent=1 // pred_region
      %174 = vsyncadd [#allocation21], 0
      %s176 = sshll.u32 %s14, 4
      %s177 = int_to_ptr.hbm [resolvable:$true] %s176
      %s178 = sshll.u32 [#allocation20], 4
      %s179 = int_to_ptr.vmem [resolvable:$true] %s178
      %181 = dma.hbm_to_vmem [thread:$0]  %s177, 16, %s179, [#allocation21]
    $region61: #{my_gru_forward.1} parent=1 // pred_fallthru
      _
    // Predicated region
    $region62: #{my_gru_forward.1} parent=1 // pred_check
      _
    $region63: #{my_gru_forward.1} parent=1 // pred_check_branch
      %183 = sbr.rel (0) target = $region65
    $region64: #{my_gru_forward.1} parent=1 // pred_region
      %185 = vsyncadd [#allocation21], 0
      %s186 = sshll.u32 %s15, 4
      %s187 = int_to_ptr.hbm [resolvable:$true] %s186
      %s188 = sshll.u32 [#allocation22], 4
      %s189 = int_to_ptr.vmem [resolvable:$true] %s188
      %194 = dma.hbm_to_vmem [thread:$0]  %s187, 256, %s189, [#allocation21], 64, 64, 4
    $region65: #{my_gru_forward.1} parent=1 // pred_fallthru
      _
    // Predicated region
    $region66: #{my_gru_forward.1} parent=1 // pred_check
      _
    $region67: #{my_gru_forward.1} parent=1 // pred_check_branch
      %196 = sbr.rel (0) target = $region69
    $region68: #{my_gru_forward.1} parent=1 // pred_region
      %198 = vsyncadd [#allocation24], 0
      %s200 = sshll.u32 %s16, 4
      %s201 = int_to_ptr.hbm [resolvable:$true] %s200
      %s202 = sshll.u32 [#allocation23], 4
      %s203 = int_to_ptr.vmem [resolvable:$true] %s202
      %205 = dma.hbm_to_vmem [thread:$0]  %s201, 16, %s203, [#allocation24]
    $region69: #{my_gru_forward.1} parent=1 // pred_fallthru
      _
    // Predicated region
    $region70: #{my_gru_forward.1} parent=1 // pred_check
      _
    $region71: #{my_gru_forward.1} parent=1 // pred_check_branch
      %207 = sbr.rel (0) target = $region73
    $region72: #{my_gru_forward.1} parent=1 // pred_region
      %209 = vsyncadd [#allocation24], 0
      %s210 = sshll.u32 %s17, 4
      %s211 = int_to_ptr.hbm [resolvable:$true] %s210
      %s212 = sshll.u32 [#allocation25], 4
      %s213 = int_to_ptr.vmem [resolvable:$true] %s212
      %218 = dma.hbm_to_vmem [thread:$0]  %s211, 256, %s213, [#allocation24], 64, 64, 4
    $region73: #{my_gru_forward.1} parent=1 // pred_fallthru
      _
    // Predicated region
    $region74: #{my_gru_forward.1} parent=1 // pred_check
      _
    $region75: #{my_gru_forward.1} parent=1 // pred_check_branch
      %220 = sbr.rel (0) target = $region77
    $region76: #{my_gru_forward.1} parent=1 // pred_region
      %222 = vsyncadd [#allocation27], 0
      %s224 = sshll.u32 %s18, 4
      %s225 = int_to_ptr.hbm [resolvable:$true] %s224
      %s226 = sshll.u32 [#allocation26], 4
      %s227 = int_to_ptr.vmem [resolvable:$true] %s226
      %229 = dma.hbm_to_vmem [thread:$0]  %s225, 16, %s227, [#allocation27]
    $region77: #{my_gru_forward.1} parent=1 // pred_fallthru
      _
    // Predicated region
    $region78: #{my_gru_forward.1} parent=1 // pred_check
      _
    $region79: #{my_gru_forward.1} parent=1 // pred_check_branch
      %231 = sbr.rel (0) target = $region81
    $region80: #{my_gru_forward.1} parent=1 // pred_region
      _
    $region81: #{my_gru_forward.1} parent=1 // pred_fallthru
      _
    // Predicated region
    $region82: #{my_gru_forward.1} parent=1 // pred_check
      _
    $region83: #{my_gru_forward.1} parent=1 // pred_check_branch
      %233 = sbr.rel (0) target = $region85
    $region84: #{my_gru_forward.1} parent=1 // pred_region
      %235 = vsyncadd [#allocation27], 0
      %s237 = sshll.u32 %s20, 4
      %s238 = int_to_ptr.hbm [resolvable:$true] %s237
      %s239 = sshll.u32 [#allocation28], 4
      %s240 = int_to_ptr.vmem [resolvable:$true] %s239
      %242 = dma.hbm_to_vmem [thread:$0]  %s238, 16, %s240, [#allocation27]
    $region85: #{my_gru_forward.1} parent=1 // pred_fallthru
      _
    // Predicated region
    $region86: #{my_gru_forward.1} parent=1 // pred_check
      _
    $region87: #{my_gru_forward.1} parent=1 // pred_check_branch
      %244 = sbr.rel (0) target = $region89
    $region88: #{my_gru_forward.1} parent=1 // pred_region
      %246 = dma.done [#allocation3], 128
    $region89: #{my_gru_forward.1} parent=1 // pred_fallthru
      _
    // Predicated region
    $region90: #{my_gru_forward.1} parent=1 // pred_check
      _
    $region91: #{my_gru_forward.1} parent=1 // pred_check_branch
      %248 = sbr.rel (0) target = $region93
    $region92: #{my_gru_forward.1} parent=1 // pred_region
      %250 = dma.done [#allocation6], 128
    $region93: #{my_gru_forward.1} parent=1 // pred_fallthru
      _
    // Predicated region
    $region94: #{my_gru_forward.1} parent=1 // pred_check
      _
    $region95: #{my_gru_forward.1} parent=1 // pred_check_branch
      %252 = sbr.rel (0) target = $region97
    $region96: #{my_gru_forward.1} parent=1 // pred_region
      %254 = dma.done [#allocation6], 128
    $region97: #{my_gru_forward.1} parent=1 // pred_fallthru
      _
    // Predicated region
    $region98: #{my_gru_forward.1} parent=1 // pred_check
      _
    $region99: #{my_gru_forward.1} parent=1 // pred_check_branch
      %256 = sbr.rel (0) target = $region101
    $region100: #{my_gru_forward.1} parent=1 // pred_region
      %258 = dma.done [#allocation9], 16
    $region101: #{my_gru_forward.1} parent=1 // pred_fallthru
      _
    // Predicated region
    $region102: #{my_gru_forward.1} parent=1 // pred_check
      _
    $region103: #{my_gru_forward.1} parent=1 // pred_check_branch
      %260 = sbr.rel (0) target = $region105
    $region104: #{my_gru_forward.1} parent=1 // pred_region
      %262 = dma.done [#allocation9], 16
    $region105: #{my_gru_forward.1} parent=1 // pred_fallthru
      _
    // Predicated region
    $region106: #{my_gru_forward.1} parent=1 // pred_check
      _
    $region107: #{my_gru_forward.1} parent=1 // pred_check_branch
      %264 = sbr.rel (0) target = $region109
    $region108: #{my_gru_forward.1} parent=1 // pred_region
      %266 = dma.done [#allocation12], 16
    $region109: #{my_gru_forward.1} parent=1 // pred_fallthru
      _
    // Predicated region
    $region110: #{my_gru_forward.1} parent=1 // pred_check
      _
    $region111: #{my_gru_forward.1} parent=1 // pred_check_branch
      %268 = sbr.rel (0) target = $region113
    $region112: #{my_gru_forward.1} parent=1 // pred_region
      %270 = dma.done [#allocation12], 16
    $region113: #{my_gru_forward.1} parent=1 // pred_fallthru
      _
    // Predicated region
    $region114: #{my_gru_forward.1} parent=1 // pred_check
      _
    $region115: #{my_gru_forward.1} parent=1 // pred_check_branch
      %272 = sbr.rel (0) target = $region117
    $region116: #{my_gru_forward.1} parent=1 // pred_region
      %274 = dma.done [#allocation15], 256
    $region117: #{my_gru_forward.1} parent=1 // pred_fallthru
      _
    // Predicated region
    $region118: #{my_gru_forward.1} parent=1 // pred_check
      _
    $region119: #{my_gru_forward.1} parent=1 // pred_check_branch
      %276 = sbr.rel (0) target = $region121
    $region120: #{my_gru_forward.1} parent=1 // pred_region
      %278 = dma.done [#allocation15], 16
    $region121: #{my_gru_forward.1} parent=1 // pred_fallthru
      _
    // Predicated region
    $region122: #{my_gru_forward.1} parent=1 // pred_check
      _
    $region123: #{my_gru_forward.1} parent=1 // pred_check_branch
      %280 = sbr.rel (0) target = $region125
    $region124: #{my_gru_forward.1} parent=1 // pred_region
      %282 = dma.done [#allocation18], 16
    $region125: #{my_gru_forward.1} parent=1 // pred_fallthru
      _
    // Predicated region
    $region126: #{my_gru_forward.1} parent=1 // pred_check
      _
    $region127: #{my_gru_forward.1} parent=1 // pred_check_branch
      %284 = sbr.rel (0) target = $region129
    $region128: #{my_gru_forward.1} parent=1 // pred_region
      %286 = dma.done [#allocation18], 16
    $region129: #{my_gru_forward.1} parent=1 // pred_fallthru
      _
    // Predicated region
    $region130: #{my_gru_forward.1} parent=1 // pred_check
      _
    $region131: #{my_gru_forward.1} parent=1 // pred_check_branch
      %288 = sbr.rel (0) target = $region133
    $region132: #{my_gru_forward.1} parent=1 // pred_region
      %290 = dma.done [#allocation21], 16
    $region133: #{my_gru_forward.1} parent=1 // pred_fallthru
      _
    // Predicated region
    $region134: #{my_gru_forward.1} parent=1 // pred_check
      _
    $region135: #{my_gru_forward.1} parent=1 // pred_check_branch
      %292 = sbr.rel (0) target = $region137
    $region136: #{my_gru_forward.1} parent=1 // pred_region
      %294 = dma.done [#allocation21], 256
    $region137: #{my_gru_forward.1} parent=1 // pred_fallthru
      _
    // Predicated region
    $region138: #{my_gru_forward.1} parent=1 // pred_check
      _
    $region139: #{my_gru_forward.1} parent=1 // pred_check_branch
      %296 = sbr.rel (0) target = $region141
    $region140: #{my_gru_forward.1} parent=1 // pred_region
      %298 = dma.done [#allocation24], 16
    $region141: #{my_gru_forward.1} parent=1 // pred_fallthru
      _
    // Predicated region
    $region142: #{my_gru_forward.1} parent=1 // pred_check
      _
    $region143: #{my_gru_forward.1} parent=1 // pred_check_branch
      %300 = sbr.rel (0) target = $region145
    $region144: #{my_gru_forward.1} parent=1 // pred_region
      %302 = dma.done [#allocation24], 256
    $region145: #{my_gru_forward.1} parent=1 // pred_fallthru
      _
    // Predicated region
    $region146: #{my_gru_forward.1} parent=1 // pred_check
      _
    $region147: #{my_gru_forward.1} parent=1 // pred_check_branch
      %304 = sbr.rel (0) target = $region149
    $region148: #{my_gru_forward.1} parent=1 // pred_region
      %306 = dma.done [#allocation27], 16
    $region149: #{my_gru_forward.1} parent=1 // pred_fallthru
      _
    // Predicated region
    $region150: #{my_gru_forward.1} parent=1 // pred_check
      _
    $region151: #{my_gru_forward.1} parent=1 // pred_check_branch
      %308 = sbr.rel (0) target = $region153
    $region152: #{my_gru_forward.1} parent=1 // pred_region
      %310 = dma.done [#allocation27], 16
    $region153: #{my_gru_forward.1} parent=1 // pred_fallthru
      _
    %v312 = vld [vmem:[%s0] sm:$0xf]
    %v313 = vld [vmem:[#allocation2] sm:$0xf]
    %v314 = vld [vmem:[#allocation2 + $0x4] sm:$0xf]
    %v315 = vld [vmem:[#allocation5] sm:$0xf]
    %v316 = vld [vmem:[#allocation5 + $0x4] sm:$0xf]
    %v317 = vld [vmem:[#allocation7] sm:$0xf]
    %v318 = vld [vmem:[#allocation7 + $0x4] sm:$0xf]
    %v319 = vld [vmem:[#allocation8] sm:$0x1]
    %v320 = vld [vmem:[#allocation10] sm:$0x1]
    %v321 = vld [vmem:[#allocation11] sm:$0x1]
    %v322 = vld [vmem:[#allocation13] sm:$0x1]
    %v323 = vpack.c.bf16 %v312, %v312
    %v325 = vperm.slane %v319, 0
    %v329 = vunpack.c.l.b16 %v313
    %v330 = vunpack.c.l.b16 %v314
    %v331 = vpack.c.b16 %v330, %v329
    %vm333 = vcmask 130048
    %v335 = vsel %vm333, %v323, 0
    %337 = vmatpush.bf16.msra.mxu0 0
    %338 = vmatpush.bf16.msra.mxu0 0
    %339 = vmatpush.bf16.msra.mxu0 0
    %340 = vmatpush.bf16.msra.mxu0 0
    %341 = vmatpush.bf16.msra.mxu0 0
    %342 = vmatpush.bf16.msra.mxu0 0
    %343 = vmatpush.bf16.msra.mxu0 0
    %344 = vmatpush.bf16.msra.mxu0 %v331
    %345 = vmatmul.bf16.gmra.mxu0 %v335
    %v346 = vpop.f32.mrf.mxu0
    %v347 = vadd.f32 %v325, %v346
    %v348 = vpop.f32.mrf.mxu0
    %349 = vdwg.mxu0
    %v350 = vxor.u32 %v347, 2147483648
    %v351 = vmul.f32 %v350, 1.442695
    %v352 = vpow.pop %v351
    %v353 = vadd.f32 %v352, 1.0
    %v354 = vrcp.pop %v353
    %v355 = vmul.f32 %v353, %v354
    %v356 = vsub.f32 1.0, %v355
    %v357 = vmul.f32 %v354, %v356
    %v358 = vadd.f32 %v354, %v357
    %vm359 = vweird.f32 %v353
    %vm360 = vweird.f32 %v354
    %vm361 = vmor %vm359, %vm360
    %v362 = vsel %vm361, %v354, %v358
    %v363 = vand.u32 2147483647, %v353
    %vm364 = vcmp.eq.f32.partialorder %v363, 8.507059e+37
    %v365 = vand.u32 %v353, 2147483648
    %v366 = vor.u32 1.1754944e-38, %v365
    %v367 = vsel %vm364, %v366, %v362
    %v368 = vmul.f32 1.0, %v367
    %v370 = vperm.slane %v320, 0
    %v374 = vunpack.c.l.b16 %v315
    %v375 = vunpack.c.l.b16 %v316
    %v376 = vpack.c.b16 %v375, %v374
    %378 = vmatpush.bf16.msra.mxu0 0
    %379 = vmatpush.bf16.msra.mxu0 0
    %380 = vmatpush.bf16.msra.mxu0 0
    %381 = vmatpush.bf16.msra.mxu0 0
    %382 = vmatpush.bf16.msra.mxu0 0
    %383 = vmatpush.bf16.msra.mxu0 0
    %384 = vmatpush.bf16.msra.mxu0 0
    %385 = vmatpush.bf16.msra.mxu0 %v376
    %386 = vmatmul.bf16.gmra.mxu0 %v335
    %v387 = vpop.f32.mrf.mxu0
    %v388 = vadd.f32 %v370, %v387
    %v389 = vpop.f32.mrf.mxu0
    %390 = vdwg.mxu0
    %v391 = vxor.u32 %v388, 2147483648
    %v392 = vmul.f32 %v391, 1.442695
    %v393 = vpow.pop %v392
    %v394 = vadd.f32 %v393, 1.0
    %v395 = vrcp.pop %v394
    %v396 = vmul.f32 %v394, %v395
    %v397 = vsub.f32 1.0, %v396
    %v398 = vmul.f32 %v395, %v397
    %v399 = vadd.f32 %v395, %v398
    %vm400 = vweird.f32 %v394
    %vm401 = vweird.f32 %v395
    %vm402 = vmor %vm400, %vm401
    %v403 = vsel %vm402, %v395, %v399
    %v404 = vand.u32 2147483647, %v394
    %vm405 = vcmp.eq.f32.partialorder %v404, 8.507059e+37
    %v406 = vand.u32 %v394, 2147483648
    %v407 = vor.u32 1.1754944e-38, %v406
    %v408 = vsel %vm405, %v407, %v403
    %v409 = vmul.f32 1.0, %v408
    %v411 = vperm.slane %v321, 0
    %v415 = vunpack.c.l.b16 %v317
    %v416 = vunpack.c.l.b16 %v318
    %v417 = vpack.c.b16 %v416, %v415
    %419 = vmatpush.bf16.msra.mxu0 0
    %420 = vmatpush.bf16.msra.mxu0 0
    %421 = vmatpush.bf16.msra.mxu0 0
    %422 = vmatpush.bf16.msra.mxu0 0
    %423 = vmatpush.bf16.msra.mxu0 0
    %424 = vmatpush.bf16.msra.mxu0 0
    %425 = vmatpush.bf16.msra.mxu0 0
    %426 = vmatpush.bf16.msra.mxu0 %v417
    %427 = vmatmul.bf16.gmra.mxu0 %v335
    %v428 = vpop.f32.mrf.mxu0
    %v429 = vadd.f32 %v411, %v428
    %v430 = vpop.f32.mrf.mxu0
    %431 = vdwg.mxu0
    %v433 = vperm.slane %v322, 0
    %v435 = vmul.f32 %v368, %v433
    %v436 = vadd.f32 %v429, %v435
    %v437 = vtanh.pop %v436
    %v438 = vsub.f32 1.0, %v409
    %v439 = vmul.f32 %v438, %v437
    %v440 = vld [vmem:[%s8] sm:$0xf]
    %v441 = vld [vmem:[%s8 + $0x4] sm:$0xf]
    %v442 = vld [vmem:[%s8 + $0x8] sm:$0xf]
    %v443 = vld [vmem:[%s8 + $0xc] sm:$0xf]
    %v444 = vld [vmem:[%s9] sm:$0xf]
    %v445 = vld [vmem:[%s9 + $0x4] sm:$0xf]
    %v446 = vld [vmem:[%s9 + $0x8] sm:$0xf]
    %v447 = vld [vmem:[%s9 + $0xc] sm:$0xf]
    %v448 = vld [vmem:[#allocation14] sm:$0xf]
    %v449 = vld [vmem:[#allocation14 + $0x4] sm:$0xf]
    %v450 = vld [vmem:[#allocation14 + $0x8] sm:$0xf]
    %v451 = vld [vmem:[#allocation14 + $0xc] sm:$0xf]
    %v452 = vld [vmem:[#allocation16] sm:$0x1]
    %v453 = vld [vmem:[#allocation17] sm:$0x1]
    %v454 = vld [vmem:[#allocation19] sm:$0x1]
    %v455 = vld [vmem:[#allocation20] sm:$0x1]
    %v456 = vpack.c.bf16 %v439, %v439
    %v458 = vperm.slane %v452, 0
    %v464 = vunpack.c.l.b16 %v440
    %v465 = vunpack.c.l.b16 %v441
    %v466 = vunpack.c.l.b16 %v442
    %v467 = vunpack.c.l.b16 %v443
    %v468 = vpack.c.b16 %v465, %v464
    %v469 = vpack.c.b16 %v467, %v466
    %vm472 = vcmask 261120
    %v474 = vsel %vm472, %v456, 0
    %476 = vmatpush.bf16.msra.mxu0 0
    %477 = vmatpush.bf16.msra.mxu0 0
    %478 = vmatpush.bf16.msra.mxu0 0
    %479 = vmatpush.bf16.msra.mxu0 0
    %480 = vmatpush.bf16.msra.mxu0 0
    %481 = vmatpush.bf16.msra.mxu0 0
    %482 = vmatpush.bf16.msra.mxu0 %v469
    %483 = vmatpush.bf16.msra.mxu0 %v468
    %484 = vmatmul.bf16.gmra.mxu0 %v474
    %v485 = vpop.f32.mrf.mxu0
    %v486 = vadd.f32 %v458, %v485
    %v487 = vpop.f32.mrf.mxu0
    %488 = vdwg.mxu0
    %v489 = vxor.u32 %v486, 2147483648
    %v490 = vmul.f32 %v489, 1.442695
    %v491 = vpow.pop %v490
    %v492 = vadd.f32 %v491, 1.0
    %v493 = vrcp.pop %v492
    %v494 = vmul.f32 %v492, %v493
    %v495 = vsub.f32 1.0, %v494
    %v496 = vmul.f32 %v493, %v495
    %v497 = vadd.f32 %v493, %v496
    %vm498 = vweird.f32 %v492
    %vm499 = vweird.f32 %v493
    %vm500 = vmor %vm498, %vm499
    %v501 = vsel %vm500, %v493, %v497
    %v502 = vand.u32 2147483647, %v492
    %vm503 = vcmp.eq.f32.partialorder %v502, 8.507059e+37
    %v504 = vand.u32 %v492, 2147483648
    %v505 = vor.u32 1.1754944e-38, %v504
    %v506 = vsel %vm503, %v505, %v501
    %v507 = vmul.f32 1.0, %v506
    %v509 = vperm.slane %v453, 0
    %v515 = vunpack.c.l.b16 %v444
    %v516 = vunpack.c.l.b16 %v445
    %v517 = vunpack.c.l.b16 %v446
    %v518 = vunpack.c.l.b16 %v447
    %v519 = vpack.c.b16 %v516, %v515
    %v520 = vpack.c.b16 %v518, %v517
    %523 = vmatpush.bf16.msra.mxu0 0
    %524 = vmatpush.bf16.msra.mxu0 0
    %525 = vmatpush.bf16.msra.mxu0 0
    %526 = vmatpush.bf16.msra.mxu0 0
    %527 = vmatpush.bf16.msra.mxu0 0
    %528 = vmatpush.bf16.msra.mxu0 0
    %529 = vmatpush.bf16.msra.mxu0 %v520
    %530 = vmatpush.bf16.msra.mxu0 %v519
    %531 = vmatmul.bf16.gmra.mxu0 %v474
    %v532 = vpop.f32.mrf.mxu0
    %v533 = vadd.f32 %v509, %v532
    %v534 = vpop.f32.mrf.mxu0
    %535 = vdwg.mxu0
    %v536 = vxor.u32 %v533, 2147483648
    %v537 = vmul.f32 %v536, 1.442695
    %v538 = vpow.pop %v537
    %v539 = vadd.f32 %v538, 1.0
    %v540 = vrcp.pop %v539
    %v541 = vmul.f32 %v539, %v540
    %v542 = vsub.f32 1.0, %v541
    %v543 = vmul.f32 %v540, %v542
    %v544 = vadd.f32 %v540, %v543
    %vm545 = vweird.f32 %v539
    %vm546 = vweird.f32 %v540
    %vm547 = vmor %vm545, %vm546
    %v548 = vsel %vm547, %v540, %v544
    %v549 = vand.u32 2147483647, %v539
    %vm550 = vcmp.eq.f32.partialorder %v549, 8.507059e+37
    %v551 = vand.u32 %v539, 2147483648
    %v552 = vor.u32 1.1754944e-38, %v551
    %v553 = vsel %vm550, %v552, %v548
    %v554 = vmul.f32 1.0, %v553
    %v556 = vperm.slane %v454, 0
    %v562 = vunpack.c.l.b16 %v448
    %v563 = vunpack.c.l.b16 %v449
    %v564 = vunpack.c.l.b16 %v450
    %v565 = vunpack.c.l.b16 %v451
    %v566 = vpack.c.b16 %v563, %v562
    %v567 = vpack.c.b16 %v565, %v564
    %570 = vmatpush.bf16.msra.mxu0 0
    %571 = vmatpush.bf16.msra.mxu0 0
    %572 = vmatpush.bf16.msra.mxu0 0
    %573 = vmatpush.bf16.msra.mxu0 0
    %574 = vmatpush.bf16.msra.mxu0 0
    %575 = vmatpush.bf16.msra.mxu0 0
    %576 = vmatpush.bf16.msra.mxu0 %v567
    %577 = vmatpush.bf16.msra.mxu0 %v566
    %578 = vmatmul.bf16.gmra.mxu0 %v474
    %v579 = vpop.f32.mrf.mxu0
    %v580 = vadd.f32 %v556, %v579
    %v581 = vpop.f32.mrf.mxu0
    %582 = vdwg.mxu0
    %v584 = vperm.slane %v455, 0
    %v586 = vmul.f32 %v507, %v584
    %v587 = vadd.f32 %v580, %v586
    %v588 = vtanh.pop %v587
    %v589 = vsub.f32 1.0, %v554
    %v590 = vmul.f32 %v589, %v588
    %v591 = vld [vmem:[#allocation22] sm:$0xf]
    %v592 = vld [vmem:[#allocation22 + $0x4] sm:$0xf]
    %v593 = vld [vmem:[#allocation22 + $0x8] sm:$0xf]
    %v594 = vld [vmem:[#allocation22 + $0xc] sm:$0xf]
    %v595 = vld [vmem:[#allocation23] sm:$0x1]
    %v596 = vld [vmem:[#allocation25] sm:$0xf]
    %v597 = vld [vmem:[#allocation25 + $0x4] sm:$0xf]
    %v598 = vld [vmem:[#allocation25 + $0x8] sm:$0xf]
    %v599 = vld [vmem:[#allocation25 + $0xc] sm:$0xf]
    %v600 = vld [vmem:[#allocation26] sm:$0x1]
    %v601 = vld [vmem:[%s19] sm:$0xf]
    %v602 = vld [vmem:[%s19 + $0x4] sm:$0xf]
    %v603 = vld [vmem:[%s19 + $0x8] sm:$0xf]
    %v604 = vld [vmem:[%s19 + $0xc] sm:$0xf]
    %v605 = vld [vmem:[#allocation28] sm:$0x1]
    %v606 = vpack.c.bf16 %v590, %v590
    %v608 = vperm.slane %v595, 0
    %v614 = vunpack.c.l.b16 %v591
    %v615 = vunpack.c.l.b16 %v592
    %v616 = vunpack.c.l.b16 %v593
    %v617 = vunpack.c.l.b16 %v594
    %v618 = vpack.c.b16 %v615, %v614
    %v619 = vpack.c.b16 %v617, %v616
    %v623 = vsel %vm472, %v606, 0
    %625 = vmatpush.bf16.msra.mxu0 0
    %626 = vmatpush.bf16.msra.mxu0 0
    %627 = vmatpush.bf16.msra.mxu0 0
    %628 = vmatpush.bf16.msra.mxu0 0
    %629 = vmatpush.bf16.msra.mxu0 0
    %630 = vmatpush.bf16.msra.mxu0 0
    %631 = vmatpush.bf16.msra.mxu0 %v619
    %632 = vmatpush.bf16.msra.mxu0 %v618
    %633 = vmatmul.bf16.gmra.mxu0 %v623
    %v634 = vpop.f32.mrf.mxu0
    %v635 = vadd.f32 %v608, %v634
    %v636 = vpop.f32.mrf.mxu0
    %637 = vdwg.mxu0
    %v638 = vmax.f32 %v635, 0.0
    %v639 = vpack.c.bf16 %v638, %v638
    %v641 = vperm.slane %v600, 0
    %v647 = vunpack.c.l.b16 %v596
    %v648 = vunpack.c.l.b16 %v597
    %v649 = vunpack.c.l.b16 %v598
    %v650 = vunpack.c.l.b16 %v599
    %v651 = vpack.c.b16 %v648, %v647
    %v652 = vpack.c.b16 %v650, %v649
    %v656 = vsel %vm472, %v639, 0
    %658 = vmatpush.bf16.msra.mxu0 0
    %659 = vmatpush.bf16.msra.mxu0 0
    %660 = vmatpush.bf16.msra.mxu0 0
    %661 = vmatpush.bf16.msra.mxu0 0
    %662 = vmatpush.bf16.msra.mxu0 0
    %663 = vmatpush.bf16.msra.mxu0 0
    %664 = vmatpush.bf16.msra.mxu0 %v652
    %665 = vmatpush.bf16.msra.mxu0 %v651
    %666 = vmatmul.bf16.gmra.mxu0 %v656
    %v667 = vpop.f32.mrf.mxu0
    %v668 = vadd.f32 %v641, %v667
    %v669 = vpop.f32.mrf.mxu0
    %670 = vdwg.mxu0
    %v671 = vmax.f32 %v668, 0.0
    %v672 = vpack.c.bf16 %v671, %v671
    %v674 = vperm.slane %v605, 0
    %v680 = vunpack.c.l.b16 %v601
    %v681 = vunpack.c.l.b16 %v602
    %v682 = vunpack.c.l.b16 %v603
    %v683 = vunpack.c.l.b16 %v604
    %v684 = vpack.c.b16 %v681, %v680
    %v685 = vpack.c.b16 %v683, %v682
    %v689 = vsel %vm472, %v672, 0
    %691 = vmatpush.bf16.msra.mxu0 0
    %692 = vmatpush.bf16.msra.mxu0 0
    %693 = vmatpush.bf16.msra.mxu0 0
    %694 = vmatpush.bf16.msra.mxu0 0
    %695 = vmatpush.bf16.msra.mxu0 0
    %696 = vmatpush.bf16.msra.mxu0 0
    %697 = vmatpush.bf16.msra.mxu0 %v685
    %698 = vmatpush.bf16.msra.mxu0 %v684
    %699 = vmatmul.bf16.gmra.mxu0 %v689
    %v700 = vpop.f32.mrf.mxu0
    %v701 = vadd.f32 %v674, %v700
    %v702 = vpop.f32.mrf.mxu0
    %703 = vdwg.mxu0
    %vm704 = vcmask 60416
    %705 = vst.msk [vmem:[#allocation29] sm:$0xf] %vm704, %v701
    // Predicated region
    $region154: #{my_gru_forward.1} parent=1 // pred_check
      _
    $region155: #{my_gru_forward.1} parent=1 // pred_check_branch
      %707 = sbr.rel (0) target = $region157
    $region156: #{my_gru_forward.1} parent=1 // pred_region
      %709 = vsyncadd [#allocation4], 0
      %s711 = sshll.u32 [#allocation29], 4
      %s712 = int_to_ptr.vmem [resolvable:$true] %s711
      %s713 = sshll.u32 %s21, 4
      %s714 = int_to_ptr.hbm [resolvable:$true] %s713
      %716 = dma.vmem_to_hbm [thread:$0]  %s712, 64, %s714, [#allocation4]
    $region157: #{my_gru_forward.1} parent=1 // pred_fallthru
      _
    // Predicated region
    $region158: #{my_gru_forward.1} parent=1 // pred_check
      _
    $region159: #{my_gru_forward.1} parent=1 // pred_check_branch
      %718 = sbr.rel (0) target = $region161
    $region160: #{my_gru_forward.1} parent=1 // pred_region
      %720 = dma.done [#allocation4], 64
    $region161: #{my_gru_forward.1} parent=1 // pred_fallthru
      _
    %721 = vsyncpa [#allocation3], 1
    %722 = vsyncpa [#allocation6], 1
    %723 = vsyncpa [#allocation9], 1
    %724 = vsyncpa [#allocation12], 1
    %725 = vsyncpa [#allocation15], 1
    %726 = vsyncpa [#allocation18], 1
    %727 = vsyncpa [#allocation21], 1
    %728 = vsyncpa [#allocation24], 1
    %729 = vsyncpa [#allocation27], 1
    %730 = vsyncpa [#allocation4], 1

</llo_original>
